<compile_context>
chip_gen: v6e
topology: v6e:2x2x1
jax: 0.10.0
libtpu: 0.0.40
codegen_flags: <defaults>
</compile_context>

<pallas_src>
import math
import numpy as np
import jax
import jax.numpy as jnp
from jax import lax
from jax.experimental import pallas as pl
from jax.experimental.pallas import tpu as pltpu

# ----------------------------- config (small, synthetic) ---------------------
CONFIG = dict(
    emb_dim=64,
    n_heads=4,
    n_groups=2,
    context_length=16,
    rope_base=500000.0,
    rope_freq=dict(factor=8.0, low_freq_factor=1.0, high_freq_factor=4.0,
                   original_context_length=8192),
    dtype=jnp.float32,
)
BATCH = 2
SEQ = CONFIG["context_length"]
EMB = CONFIG["emb_dim"]
N_HEADS = CONFIG["n_heads"]
N_GROUPS = CONFIG["n_groups"]
HEAD_DIM = EMB // N_HEADS
HALF = HEAD_DIM // 2
KV_DIM = HEAD_DIM * N_GROUPS
HPG = N_HEADS // N_GROUPS          # query heads per KV group
QKV_W = EMB + 2 * KV_DIM           # 128 : fused [q | k | v] width (lane dense)
W_BIG = 2 * QKV_W                  # 256 : [q|k|v | rot(q)|rot(k)|0]
BS = BATCH * SEQ                   # 32  : batch folded into the sublane (row) dim
NEG_INF = -1e30                    # finite mask sentinel

# Group-major head order: position p = g*HPG + i  <->  original head h = i*N_GROUPS + g.
PERM = tuple((p % HPG) * N_GROUPS + p // HPG for p in range(N_HEADS))


# ----------------------------- RoPE parameter setup (plain JAX glue) ---------
def get_rope_params(head_dim, theta_base, context_length, freq_config):
    inv_freq = 1.0 / (theta_base ** (np.arange(0, head_dim, 2, dtype=np.float64) / head_dim))
    if freq_config is not None:
        orig_ctx = freq_config["original_context_length"]
        low_wl = orig_ctx / freq_config["low_freq_factor"]
        high_wl = orig_ctx / freq_config["high_freq_factor"]
        wavelen = 2.0 * math.pi / inv_freq
        inv_freq_llama = np.where(wavelen > low_wl, inv_freq / freq_config["factor"], inv_freq)
        smooth = ((orig_ctx / wavelen - freq_config["low_freq_factor"])
                  / (freq_config["high_freq_factor"] - freq_config["low_freq_factor"]))
        smoothed = (1.0 - smooth) * (inv_freq / freq_config["factor"]) + smooth * inv_freq
        is_medium = (wavelen <= low_wl) & (wavelen >= high_wl)
        inv_freq = np.where(is_medium, smoothed, inv_freq_llama)
    positions = np.arange(context_length, dtype=np.float64)
    angles = positions[:, None] * inv_freq[None, :]          # (ctx, head_dim/2)
    angles = np.concatenate([angles, angles], axis=1)        # (ctx, head_dim)
    return (jnp.asarray(np.cos(angles), dtype=jnp.float32),
            jnp.asarray(np.sin(angles), dtype=jnp.float32))


# ----------------------------- fused-weight / table construction (wrapper) ---
def _rotate_half_cols(w, n_blocks):
    """Sign-flipped / column-permuted copy of w so that x @ result ==
    rotate_half(x @ w) applied independently per head_dim-wide block (exact in fp)."""
    e = w.shape[0]
    w4 = w.reshape(e, n_blocks, 2, HALF)
    return jnp.stack([-w4[:, :, 1, :], w4[:, :, 0, :]], axis=2).reshape(e, n_blocks * HEAD_DIM)


def _build_fused_params(wq, wk, wv, wo, cos, sin):
    inv_scale = 1.0 / math.sqrt(HEAD_DIM)
    # Group-major reorder of the Q weight columns and W_O rows (free, wrapper-side):
    # each group's HPG heads become one contiguous lane block in-kernel and the head
    # outputs are consumed in plain loop order (no lane permute on the output path).
    wq_gm = jnp.concatenate([wq[:, h * HEAD_DIM:(h + 1) * HEAD_DIM] for h in PERM], axis=1)
    wo_gm = jnp.concatenate([wo[h * HEAD_DIM:(h + 1) * HEAD_DIM, :] for h in PERM], axis=0)

    # [ q | k | v ]  and  [ rot(q) | rot(k) | 0 ]  ->  (E, 256) lane-dense bf16 MXU weight.
    wqkv = jnp.concatenate([wq_gm, wk, wv], axis=1)                            # (E, 128)
    wrot = jnp.concatenate([_rotate_half_cols(wq_gm, N_HEADS),
                            _rotate_half_cols(wk, N_GROUPS),
                            jnp.zeros_like(wv)], axis=1)                       # (E, 128)
    w_big = jnp.concatenate([wqkv, wrot], axis=1).astype(jnp.bfloat16)         # (E, 256)

    # cos/sin tables tiled over Q heads and K groups; V columns are identity (cos=1, sin=0).
    # 1/sqrt(head_dim) folded into the Q columns.  Tiled over batch (rows = (b, s)) and
    # packed as one lane-dense f32 (B*S, 256) operand (kept f32 for exact RoPE).
    cs = jnp.concatenate([jnp.tile(cos * inv_scale, (1, N_HEADS)),
                          jnp.tile(cos, (1, N_GROUPS)),
                          jnp.ones((SEQ, KV_DIM), jnp.float32)], axis=1)       # (S, 128)
    sn = jnp.concatenate([jnp.tile(sin * inv_scale, (1, N_HEADS)),
                          jnp.tile(sin, (1, N_GROUPS)),
                          jnp.zeros((SEQ, KV_DIM), jnp.float32)], axis=1)      # (S, 128)
    cssn = jnp.tile(jnp.concatenate([cs, sn], axis=1), (BATCH, 1))             # (B*S, 256)
    return w_big, wo_gm.astype(jnp.bfloat16), cssn


def _build_mask_bias():
    """Additive mask for the fused (H*B*S, G*B*S) scores: 0 where (same batch, query head's
    own KV group, causal), NEG_INF elsewhere.  Static, built once with numpy (no in-kernel
    iota/div/mod chain).  Every row keeps its diagonal valid, so softmax never sees an
    all-masked row."""
    r = np.arange(N_HEADS * BS)
    c = np.arange(N_GROUPS * BS)
    g_r = (r // BS) // HPG            # query head's KV group (group-major head order)
    b_r = (r % BS) // SEQ
    s_r = r % SEQ
    g_c = c // BS
    b_c = (c % BS) // SEQ
    t_c = c % SEQ
    valid = ((g_c[None, :] == g_r[:, None])
             & (b_c[None, :] == b_r[:, None])
             & (t_c[None, :] <= s_r[:, None]))
    return jnp.asarray(np.where(valid, 0.0, NEG_INF), dtype=jnp.float32)


# ----------------------------- Pallas kernel ---------------------------------
def gqa_kernel(x_ref, w_ref, wo_ref, cssn_ref, bias_ref, o_ref):
    x = x_ref[...]                                                      # (B*S, E) bf16

    # One fused 256-lane MXU matmul for the whole batch: q|k|v and their rotate_half copies.
    proj = jnp.dot(x, w_ref[...], preferred_element_type=jnp.float32)  # (B*S, 256) f32
    qkv = proj[:, :QKV_W]            # [q heads (group-major) | k groups | v groups]
    rot = proj[:, QKV_W:]            # rotate_half per hd-block (sign folded in weight)

    # RoPE for all Q heads and K groups at once (V passes through: cos=1, sin=0);
    # 1/sqrt(head_dim) already folded into the Q columns of the table.
    roped = qkv * cssn_ref[:, :QKV_W] + rot * cssn_ref[:, QKV_W:]      # (B*S, 128) f32

    q = roped[:, :EMB]                                                 # (B*S, H*hd)
    k = roped[:, EMB:EMB + KV_DIM]                                     # (B*S, G*hd)
    v = roped[:, EMB + KV_DIM:]                                        # (B*S, G*hd)

    # Stack all query heads / both KV groups along sublanes once -> a single scores / p@V
    # matmul pair for every (batch, group, head).  Group-major ordering makes these
    # consecutive contiguous lane slices (no interleaved head gather).
    # TODO(synk): a single pltpu.einshape relayout could replace the axis-0 concatenates.
    q_all = jnp.concatenate(
        [q[:, hp * HEAD_DIM:(hp + 1) * HEAD_DIM] for hp in range(N_HEADS)],
        axis=0).astype(jnp.bfloat16)                                   # (H*B*S, hd)
    k_cat = jnp.concatenate(
        [k[:, g * HEAD_DIM:(g + 1) * HEAD_DIM] for g in range(N_GROUPS)],
        axis=0).astype(jnp.bfloat16)                                   # (G*B*S, hd)
    v_cat = jnp.concatenate(
        [v[:, g * HEAD_DIM:(g + 1) * HEAD_DIM] for g in range(N_GROUPS)],
        axis=0).astype(jnp.bfloat16)                                   # (G*B*S, hd)

    # q @ k^T without materializing a transpose (contract last dims); the precomputed
    # additive bias enforces same-batch / own-group / causal in one VALU add.
    scores = lax.dot_general(q_all, k_cat,
                             dimension_numbers=(((1,), (1,)), ((), ())),
                             preferred_element_type=jnp.float32)       # (H*B*S, G*B*S) f32
    scores = scores + bias_ref[...]
    m = jnp.max(scores, axis=-1, keepdims=True)
    probs = jnp.exp(scores - m)                    # masked entries underflow to exactly 0
    denom = jnp.sum(probs, axis=-1, keepdims=True)
    probs = probs * pl.reciprocal(denom, approx=True)                  # EUP vrcp, ~free

    og = jnp.dot(probs.astype(jnp.bfloat16), v_cat,
                 preferred_element_type=jnp.float32)                   # (H*B*S, hd) f32

    # Output projection accumulated per head block: sublane slices only (cheap), no lane
    # concat / permute -- W_O rows were pre-permuted group-major in the wrapper.
    out = None
    for h in range(N_HEADS):
        contrib = jnp.dot(og[h * BS:(h + 1) * BS, :].astype(jnp.bfloat16),
                          wo_ref[h * HEAD_DIM:(h + 1) * HEAD_DIM, :],
                          preferred_element_type=jnp.float32)          # (B*S, E) f32
        out = contrib if out is None else out + contrib

    # (B*S, E) = (32, 64) store: a 128-lane-dense slab would need an in-kernel
    # sublane<->lane relayout that costs more than the masked vst it removes at this size.
    o_ref[...] = out.astype(o_ref.dtype)


def gqa_forward(x, wq, wk, wv, wo, cos, sin):
    B, S, E = x.shape
    out_dtype = x.dtype
    w_big, wo_gm, cssn = _build_fused_params(wq, wk, wv, wo, cos, sin)
    bias = _build_mask_bias()
    x2d = x.astype(jnp.bfloat16).reshape(B * S, E)

    flops = (2 * BS * E * W_BIG                                       # fused projection
             + 2 * 2 * (N_HEADS * BS) * (N_GROUPS * BS) * HEAD_DIM    # scores + p@V
             + 2 * BS * E * E)                                        # output projection
    transcendentals = (N_HEADS * BS) * (N_GROUPS * BS) + N_HEADS * BS  # exp + vrcp
    bytes_accessed = int(x2d.nbytes + w_big.nbytes + wo_gm.nbytes + cssn.nbytes
                         + bias.nbytes + BS * E * jnp.dtype(out_dtype).itemsize)

    # TODO(synk): for SEQ >> 128 switch to a flash-style KV-tiled grid axis ("arbitrary",
    # online softmax) instead of materializing (H*B*S, G*B*S) scores, with ~256-wide tiles
    # on v7x (64 MiB physical VMEM) vs ~512 on v5e/v6e; for large B split the stacked row
    # dim across a core_parallel grid axis so both v7x TensorCores are used.
    out2d = pl.pallas_call(
        gqa_kernel,
        out_shape=jax.ShapeDtypeStruct((B * S, E), out_dtype),
        grid=(1,),                     # batch folded into one step (single-TC v5e/v6e win)
        in_specs=[
            pl.BlockSpec((BS, E), lambda i: (0, 0)),                      # x (bf16)
            pl.BlockSpec((E, W_BIG), lambda i: (0, 0)),                   # fused qkv+rot W
            pl.BlockSpec((E, E), lambda i: (0, 0)),                       # W_O (group-major rows)
            pl.BlockSpec((BS, 2 * QKV_W), lambda i: (0, 0)),              # packed cos|sin (f32)
            pl.BlockSpec((N_HEADS * BS, N_GROUPS * BS), lambda i: (0, 0)),  # additive mask
        ],
        out_specs=pl.BlockSpec((BS, E), lambda i: (0, 0)),
        compiler_params=pltpu.CompilerParams(
            dimension_semantics=("arbitrary",),
            vmem_limit_bytes=32 * 1024 * 1024,
        ),
        cost_estimate=pl.CostEstimate(flops=flops,
                                      transcendentals=transcendentals,
                                      bytes_accessed=bytes_accessed),
    )(x2d, w_big, wo_gm, cssn, bias)
    return out2d.reshape(B, S, E)


# ----------------------------- pure-JAX reference (for verification) ---------
def gqa_reference(x, wq, wk, wv, wo, cos, sin):
    B, S, E = x.shape
    q = (x @ wq).reshape(B, S, N_HEADS, HEAD_DIM).transpose(0, 2, 1, 3)
    k = (x @ wk).reshape(B, S, N_GROUPS, HEAD_DIM).transpose(0, 2, 1, 3)
    v = (x @ wv).reshape(B, S, N_GROUPS, HEAD_DIM).transpose(0, 2, 1, 3)

    def rope(t):
        t1 = t[..., :HALF]
        t2 = t[..., HALF:]
        rot = jnp.concatenate([-t2, t1], axis=-1)
        return t * cos[None, None] + rot * sin[None, None]

    q, k = rope(q), rope(k)
    q = q.reshape(B, HPG, N_GROUPS, S, HEAD_DIM)
    scores = jnp.einsum('bigsd,bgtd->bigst', q, k) / (HEAD_DIM ** 0.5)
    mask = jnp.tril(jnp.ones((S, S), dtype=bool))
    scores = jnp.where(mask, scores, -jnp.inf)
    p = jax.nn.softmax(scores, axis=-1)
    out = jnp.einsum('bigst,bgtd->bigsd', p, v)
    out = out.reshape(B, N_HEADS, S, HEAD_DIM).transpose(0, 2, 1, 3).reshape(B, S, E)
    return out @ wo


# ----------------------------- main -------------------------------------------
if __name__ == "__main__":
    dtype = CONFIG["dtype"]
    key = jax.random.PRNGKey(0)
    kx, kq, kk, kv, ko = jax.random.split(key, 5)

    x = jax.random.normal(kx, (BATCH, SEQ, EMB), dtype=dtype)
    # Weights stored as (in, out) == W_torch.T
    wq = (0.02 * jax.random.normal(kq, (EMB, EMB))).astype(dtype)
    wk = (0.02 * jax.random.normal(kk, (EMB, KV_DIM))).astype(dtype)
    wv = (0.02 * jax.random.normal(kv, (EMB, KV_DIM))).astype(dtype)
    wo = (0.02 * jax.random.normal(ko, (EMB, EMB))).astype(dtype)

    cos, sin = get_rope_params(HEAD_DIM, CONFIG["rope_base"], SEQ, CONFIG["rope_freq"])

    out = gqa_forward(x, wq, wk, wv, wo, cos, sin)
    out = jax.block_until_ready(out)

    ref = jax.block_until_ready(gqa_reference(x, wq, wk, wv, wo, cos, sin))
    assert out.shape == (BATCH, SEQ, EMB)
    # bf16 MXU operands + approx reciprocal => loosened tolerance vs. f32 reference.
    np.testing.assert_allclose(np.asarray(out), np.asarray(ref), atol=2e-2, rtol=2e-2)

    print("KERNEL_OK")
</pallas_src>

<mosaic_0001>
module attributes {stable_mosaic.version = 11 : i64} {
  func.func @gqa_kernel(%arg0: i32, %arg1: memref<32x64xbf16, #tpu.memory_space<vmem>>, %arg2: memref<64x256xbf16, #tpu.memory_space<vmem>>, %arg3: memref<64x64xbf16, #tpu.memory_space<vmem>>, %arg4: memref<32x256xf32, #tpu.memory_space<vmem>>, %arg5: memref<128x64xf32, #tpu.memory_space<vmem>>, %arg6: memref<32x64xf32, #tpu.memory_space<vmem>>) attributes {dimension_semantics = [#tpu.dimension_semantics<arbitrary>], iteration_bounds = array<i64: 1>, scalar_prefetch = 0 : i64, scratch_operands = 0 : i64, tpu.core_type = #tpu.core_type<tc>, window_params = [{pipeline_mode = #tpu.pipeline_mode<synchronous>, transform_indices = @transform_0, window_bounds = array<i64: 32, 64>}, {pipeline_mode = #tpu.pipeline_mode<synchronous>, transform_indices = @transform_1, window_bounds = array<i64: 64, 256>}, {pipeline_mode = #tpu.pipeline_mode<synchronous>, transform_indices = @transform_2, window_bounds = array<i64: 64, 64>}, {pipeline_mode = #tpu.pipeline_mode<synchronous>, transform_indices = @transform_3, window_bounds = array<i64: 32, 256>}, {pipeline_mode = #tpu.pipeline_mode<synchronous>, transform_indices = @transform_4, window_bounds = array<i64: 128, 64>}, {pipeline_mode = #tpu.pipeline_mode<synchronous>, transform_indices = @transform_5, window_bounds = array<i64: 32, 64>}]} {
    %c0 = arith.constant 0 : index
    %c0_0 = arith.constant 0 : index
    %0 = vector.load %arg1[%c0, %c0_0] : memref<32x64xbf16, #tpu.memory_space<vmem>>, vector<32x64xbf16>
    %c0_1 = arith.constant 0 : index
    %c0_2 = arith.constant 0 : index
    %1 = vector.load %arg2[%c0_1, %c0_2] : memref<64x256xbf16, #tpu.memory_space<vmem>>, vector<64x256xbf16>
    %cst = arith.constant dense<0.000000e+00> : vector<32x256xf32>
    %2 = tpu.matmul %0, %1, %cst {dimension_numbers = #tpu.dot_dimension_numbers<[1], [0], [0], [1], [0, 0, 1, 1], [], []>} : vector<32x64xbf16>, vector<64x256xbf16>, vector<32x256xf32> -> vector<32x256xf32>
    %3 = vector.extract_strided_slice %2 {offsets = [0, 0], sizes = [32, 128], strides = [1, 1]} : vector<32x256xf32> to vector<32x128xf32>
    %4 = vector.extract_strided_slice %2 {offsets = [0, 128], sizes = [32, 128], strides = [1, 1]} : vector<32x256xf32> to vector<32x128xf32>
    %c0_3 = arith.constant 0 : index
    %c0_4 = arith.constant 0 : index
    %5 = vector.load %arg4[%c0_3, %c0_4] : memref<32x256xf32, #tpu.memory_space<vmem>>, vector<32x128xf32>
    %6 = arith.mulf %3, %5 : vector<32x128xf32>
    %c0_5 = arith.constant 0 : index
    %c128 = arith.constant 128 : index
    %7 = vector.load %arg4[%c0_5, %c128] : memref<32x256xf32, #tpu.memory_space<vmem>>, vector<32x128xf32>
    %8 = arith.mulf %4, %7 : vector<32x128xf32>
    %9 = arith.addf %6, %8 : vector<32x128xf32>
    %10 = vector.extract_strided_slice %9 {offsets = [0, 0], sizes = [32, 64], strides = [1, 1]} : vector<32x128xf32> to vector<32x64xf32>
    %11 = vector.extract_strided_slice %9 {offsets = [0, 64], sizes = [32, 32], strides = [1, 1]} : vector<32x128xf32> to vector<32x32xf32>
    %12 = vector.extract_strided_slice %9 {offsets = [0, 96], sizes = [32, 32], strides = [1, 1]} : vector<32x128xf32> to vector<32x32xf32>
    %13 = vector.extract_strided_slice %10 {offsets = [0, 0], sizes = [32, 16], strides = [1, 1]} : vector<32x64xf32> to vector<32x16xf32>
    %14 = vector.extract_strided_slice %10 {offsets = [0, 16], sizes = [32, 16], strides = [1, 1]} : vector<32x64xf32> to vector<32x16xf32>
    %15 = vector.extract_strided_slice %10 {offsets = [0, 32], sizes = [32, 16], strides = [1, 1]} : vector<32x64xf32> to vector<32x16xf32>
    %16 = vector.extract_strided_slice %10 {offsets = [0, 48], sizes = [32, 16], strides = [1, 1]} : vector<32x64xf32> to vector<32x16xf32>
    %17 = tpu.concatenate %13, %14, %15, %16 in 0 : vector<32x16xf32>, vector<32x16xf32>, vector<32x16xf32>, vector<32x16xf32> -> vector<128x16xf32>
    %18 = arith.truncf %17 : vector<128x16xf32> to vector<128x16xbf16>
    %19 = vector.extract_strided_slice %11 {offsets = [0, 0], sizes = [32, 16], strides = [1, 1]} : vector<32x32xf32> to vector<32x16xf32>
    %20 = vector.extract_strided_slice %11 {offsets = [0, 16], sizes = [32, 16], strides = [1, 1]} : vector<32x32xf32> to vector<32x16xf32>
    %21 = tpu.concatenate %19, %20 in 0 : vector<32x16xf32>, vector<32x16xf32> -> vector<64x16xf32>
    %22 = arith.truncf %21 : vector<64x16xf32> to vector<64x16xbf16>
    %23 = vector.extract_strided_slice %12 {offsets = [0, 0], sizes = [32, 16], strides = [1, 1]} : vector<32x32xf32> to vector<32x16xf32>
    %24 = vector.extract_strided_slice %12 {offsets = [0, 16], sizes = [32, 16], strides = [1, 1]} : vector<32x32xf32> to vector<32x16xf32>
    %25 = tpu.concatenate %23, %24 in 0 : vector<32x16xf32>, vector<32x16xf32> -> vector<64x16xf32>
    %26 = arith.truncf %25 : vector<64x16xf32> to vector<64x16xbf16>
    %cst_6 = arith.constant dense<0.000000e+00> : vector<128x64xf32>
    %27 = tpu.matmul %18, %22, %cst_6 {dimension_numbers = #tpu.dot_dimension_numbers<[1], [1], [0], [0], [0, 0, 1, 0], [], []>} : vector<128x16xbf16>, vector<64x16xbf16>, vector<128x64xf32> -> vector<128x64xf32>
    %c0_7 = arith.constant 0 : index
    %c0_8 = arith.constant 0 : index
    %28 = vector.load %arg5[%c0_7, %c0_8] : memref<128x64xf32, #tpu.memory_space<vmem>>, vector<128x64xf32>
    %29 = arith.addf %27, %28 : vector<128x64xf32>
    %cst_9 = arith.constant dense<0xFF800000> : vector<128xf32>
    %30 = vector.multi_reduction <maximumf>, %29, %cst_9 [1] : vector<128x64xf32> to vector<128xf32>
    %31 = vector.shape_cast %30 : vector<128xf32> to vector<128x1xf32>
    %32 = vector.broadcast %31 : vector<128x1xf32> to vector<128x64xf32>
    %33 = arith.subf %29, %32 : vector<128x64xf32>
    %34 = math.exp %33 : vector<128x64xf32>
    %cst_10 = arith.constant dense<0.000000e+00> : vector<128xf32>
    %35 = vector.multi_reduction <add>, %34, %cst_10 [1] : vector<128x64xf32> to vector<128xf32>
    %36 = vector.shape_cast %35 : vector<128xf32> to vector<128x1xf32>
    %37 = tpu.reciprocal %36 {approx = true} : vector<128x1xf32> -> vector<128x1xf32>
    %38 = vector.broadcast %37 : vector<128x1xf32> to vector<128x64xf32>
    %39 = arith.mulf %34, %38 : vector<128x64xf32>
    %40 = arith.truncf %39 : vector<128x64xf32> to vector<128x64xbf16>
    %cst_11 = arith.constant dense<0.000000e+00> : vector<128x16xf32>
    %41 = tpu.matmul %40, %26, %cst_11 {dimension_numbers = #tpu.dot_dimension_numbers<[1], [0], [0], [1], [0, 0, 1, 1], [], []>} : vector<128x64xbf16>, vector<64x16xbf16>, vector<128x16xf32> -> vector<128x16xf32>
    %42 = vector.extract_strided_slice %41 {offsets = [0, 0], sizes = [32, 16], strides = [1, 1]} : vector<128x16xf32> to vector<32x16xf32>
    %43 = arith.truncf %42 : vector<32x16xf32> to vector<32x16xbf16>
    %c0_12 = arith.constant 0 : index
    %c0_13 = arith.constant 0 : index
    %44 = vector.load %arg3[%c0_12, %c0_13] : memref<64x64xbf16, #tpu.memory_space<vmem>>, vector<16x64xbf16>
    %cst_14 = arith.constant dense<0.000000e+00> : vector<32x64xf32>
    %45 = tpu.matmul %43, %44, %cst_14 {dimension_numbers = #tpu.dot_dimension_numbers<[1], [0], [0], [1], [0, 0, 1, 1], [], []>} : vector<32x16xbf16>, vector<16x64xbf16>, vector<32x64xf32> -> vector<32x64xf32>
    %46 = vector.extract_strided_slice %41 {offsets = [32, 0], sizes = [32, 16], strides = [1, 1]} : vector<128x16xf32> to vector<32x16xf32>
    %47 = arith.truncf %46 : vector<32x16xf32> to vector<32x16xbf16>
    %c16 = arith.constant 16 : index
    %c0_15 = arith.constant 0 : index
    %48 = vector.load %arg3[%c16, %c0_15] : memref<64x64xbf16, #tpu.memory_space<vmem>>, vector<16x64xbf16>
    %cst_16 = arith.constant dense<0.000000e+00> : vector<32x64xf32>
    %49 = tpu.matmul %47, %48, %cst_16 {dimension_numbers = #tpu.dot_dimension_numbers<[1], [0], [0], [1], [0, 0, 1, 1], [], []>} : vector<32x16xbf16>, vector<16x64xbf16>, vector<32x64xf32> -> vector<32x64xf32>
    %50 = arith.addf %45, %49 : vector<32x64xf32>
    %51 = vector.extract_strided_slice %41 {offsets = [64, 0], sizes = [32, 16], strides = [1, 1]} : vector<128x16xf32> to vector<32x16xf32>
    %52 = arith.truncf %51 : vector<32x16xf32> to vector<32x16xbf16>
    %c32 = arith.constant 32 : index
    %c0_17 = arith.constant 0 : index
    %53 = vector.load %arg3[%c32, %c0_17] : memref<64x64xbf16, #tpu.memory_space<vmem>>, vector<16x64xbf16>
    %cst_18 = arith.constant dense<0.000000e+00> : vector<32x64xf32>
    %54 = tpu.matmul %52, %53, %cst_18 {dimension_numbers = #tpu.dot_dimension_numbers<[1], [0], [0], [1], [0, 0, 1, 1], [], []>} : vector<32x16xbf16>, vector<16x64xbf16>, vector<32x64xf32> -> vector<32x64xf32>
    %55 = arith.addf %50, %54 : vector<32x64xf32>
    %56 = vector.extract_strided_slice %41 {offsets = [96, 0], sizes = [32, 16], strides = [1, 1]} : vector<128x16xf32> to vector<32x16xf32>
    %57 = arith.truncf %56 : vector<32x16xf32> to vector<32x16xbf16>
    %c48 = arith.constant 48 : index
    %c0_19 = arith.constant 0 : index
    %58 = vector.load %arg3[%c48, %c0_19] : memref<64x64xbf16, #tpu.memory_space<vmem>>, vector<16x64xbf16>
    %cst_20 = arith.constant dense<0.000000e+00> : vector<32x64xf32>
    %59 = tpu.matmul %57, %58, %cst_20 {dimension_numbers = #tpu.dot_dimension_numbers<[1], [0], [0], [1], [0, 0, 1, 1], [], []>} : vector<32x16xbf16>, vector<16x64xbf16>, vector<32x64xf32> -> vector<32x64xf32>
    %60 = arith.addf %55, %59 : vector<32x64xf32>
    %c0_21 = arith.constant 0 : index
    %c0_22 = arith.constant 0 : index
    %61 = vector.load %arg6[%c0_21, %c0_22] : memref<32x64xf32, #tpu.memory_space<vmem>>, vector<32x64xf32>
    tpu.vector_store %arg6[%c0_21, %c0_22], %60 {strides = array<i32>} : memref<32x64xf32, #tpu.memory_space<vmem>>, vector<32x64xf32>,
    return
  }
  func.func @transform_0(%arg0: i32) -> (i32, i32) {
    %c0_i32 = arith.constant 0 : i32
    %c0_i32_0 = arith.constant 0 : i32
    %c0_i32_1 = arith.constant 0 : i32
    return %c0_i32, %c0_i32_0 : i32, i32
  }
  func.func @transform_1(%arg0: i32) -> (i32, i32) {
    %c0_i32 = arith.constant 0 : i32
    %c0_i32_0 = arith.constant 0 : i32
    %c0_i32_1 = arith.constant 0 : i32
    return %c0_i32, %c0_i32_0 : i32, i32
  }
  func.func @transform_2(%arg0: i32) -> (i32, i32) {
    %c0_i32 = arith.constant 0 : i32
    %c0_i32_0 = arith.constant 0 : i32
    %c0_i32_1 = arith.constant 0 : i32
    return %c0_i32, %c0_i32_0 : i32, i32
  }
  func.func @transform_3(%arg0: i32) -> (i32, i32) {
    %c0_i32 = arith.constant 0 : i32
    %c0_i32_0 = arith.constant 0 : i32
    %c0_i32_1 = arith.constant 0 : i32
    return %c0_i32, %c0_i32_0 : i32, i32
  }
  func.func @transform_4(%arg0: i32) -> (i32, i32) {
    %c0_i32 = arith.constant 0 : i32
    %c0_i32_0 = arith.constant 0 : i32
    %c0_i32_1 = arith.constant 0 : i32
    return %c0_i32, %c0_i32_0 : i32, i32
  }
  func.func @transform_5(%arg0: i32) -> (i32, i32) {
    %c0_i32 = arith.constant 0 : i32
    %c0_i32_0 = arith.constant 0 : i32
    %c0_i32_1 = arith.constant 0 : i32
    return %c0_i32, %c0_i32_0 : i32, i32
  }
}

</mosaic_0001>

<llo_original>
// kernel: tpu_custom_call.1
$region0: #{tpu_custom_call.1}
  #allocation0 [shape = 'u32[]', space=smem, size = 0x4, offset = 0x4, fixed_abs, tag = 'smem constant byte address 0x4 - core index']
  #allocation1 [shape = 'u32[144,128]{1,0:T(1,128)}', space=vmem, size = 0x12000, scoped, tag = 'internal scratch']
  %s0 = inlined_call_operand.vmem [shape: bf16[32,64], index: 0, kind: input, shape index: {}]
  %s1 = inlined_call_operand.vmem [shape: bf16[64,256], index: 1, kind: input, shape index: {}]
  %s2 = inlined_call_operand.vmem [shape: bf16[64,64], index: 2, kind: input, shape index: {}]
  %s3 = inlined_call_operand.vmem [shape: f32[32,256], index: 3, kind: input, shape index: {}]
  %s4 = inlined_call_operand.vmem [shape: f32[128,64], index: 4, kind: input, shape index: {}]
  %s5 = inlined_call_operand.hbm [shape: f32[32,64], index: 5, kind: output, shape index: {}]
  %s6 = sld [smem:[#allocation0]]
  $region30: #{tpu_custom_call.1} parent=0
    _
  %s8 = ssub.s32 1, %s6
  %s9 = scalar_select 0, %s8, %s6
  $region1: #{tpu_custom_call.1} parent=0
    #allocation2 [shape = 'u8[16384]{0}', space=vmem, size = 0x4000, scoped, tag = 'output window, operand 0, single buffered']
    #allocation3 [shape = 's32[1]{0}', space=sflag, size = 0x4, scoped, tag = 'scoped memory for tpu_custom_call.1']
    %10 = vsyncpa [#allocation3], 0
    // Predicated region
    $region2: #{tpu_custom_call.1} parent=1 // pred_check
      _
    $region3: #{tpu_custom_call.1} parent=1 // pred_check_branch
      %12 = sbr.rel (0) target = $region5
    $region4: #{tpu_custom_call.1} parent=1 // pred_region
      _
    $region5: #{tpu_custom_call.1} parent=1 // pred_fallthru
      _
    // Predicated region
    $region6: #{tpu_custom_call.1} parent=1 // pred_check
      _
    $region7: #{tpu_custom_call.1} parent=1 // pred_check_branch
      %14 = sbr.rel (0) target = $region9
    $region8: #{tpu_custom_call.1} parent=1 // pred_region
      _
    $region9: #{tpu_custom_call.1} parent=1 // pred_fallthru
      _
    // Predicated region
    $region10: #{tpu_custom_call.1} parent=1 // pred_check
      _
    $region11: #{tpu_custom_call.1} parent=1 // pred_check_branch
      %16 = sbr.rel (0) target = $region13
    $region12: #{tpu_custom_call.1} parent=1 // pred_region
      _
    $region13: #{tpu_custom_call.1} parent=1 // pred_fallthru
      _
    // Predicated region
    $region14: #{tpu_custom_call.1} parent=1 // pred_check
      _
    $region15: #{tpu_custom_call.1} parent=1 // pred_check_branch
      %18 = sbr.rel (0) target = $region17
    $region16: #{tpu_custom_call.1} parent=1 // pred_region
      _
    $region17: #{tpu_custom_call.1} parent=1 // pred_fallthru
      _
    // Predicated region
    $region18: #{tpu_custom_call.1} parent=1 // pred_check
      _
    $region19: #{tpu_custom_call.1} parent=1 // pred_check_branch
      %20 = sbr.rel (0) target = $region21
    $region20: #{tpu_custom_call.1} parent=1 // pred_region
      _
    $region21: #{tpu_custom_call.1} parent=1 // pred_fallthru
      _
    %v22 = vld [vmem:[%s0] sm:$0xf]
    %v23 = vld [vmem:[%s0 + $0x4] sm:$0xf]
    %v24 = vld [vmem:[%s0 + $0x8] sm:$0xf]
    %v25 = vld [vmem:[%s0 + $0xc] sm:$0xf]
    %v26 = vld [vmem:[%s1] sm:$0xff]
    %v27 = vld [vmem:[%s1 + $0x8] sm:$0xff]
    %v28 = vld [vmem:[%s1 + $0x10] sm:$0xff]
    %v29 = vld [vmem:[%s1 + $0x18] sm:$0xff]
    %v30 = vld [vmem:[%s1 + $0x20] sm:$0xff]
    %v31 = vld [vmem:[%s1 + $0x28] sm:$0xff]
    %v32 = vld [vmem:[%s1 + $0x30] sm:$0xff]
    %v33 = vld [vmem:[%s1 + $0x38] sm:$0xff]
    %v38 = vunpack.c.l.b16 %v22
    %v39 = vunpack.c.l.b16 %v23
    %v40 = vunpack.c.l.b16 %v24
    %v41 = vunpack.c.l.b16 %v25
    %v42 = vpack.c.b16 %v39, %v38
    %v43 = vpack.c.b16 %v41, %v40
    %v52 = vunpack.c.l.b16 %v26
    %v53 = vunpack.c.h.b16 %v26
    %v54 = vunpack.c.l.b16 %v27
    %v55 = vunpack.c.h.b16 %v27
    %v56 = vunpack.c.l.b16 %v28
    %v57 = vunpack.c.h.b16 %v28
    %v58 = vunpack.c.l.b16 %v29
    %v59 = vunpack.c.h.b16 %v29
    %v60 = vunpack.c.l.b16 %v30
    %v61 = vunpack.c.h.b16 %v30
    %v62 = vunpack.c.l.b16 %v31
    %v63 = vunpack.c.h.b16 %v31
    %v64 = vunpack.c.l.b16 %v32
    %v65 = vunpack.c.h.b16 %v32
    %v66 = vunpack.c.l.b16 %v33
    %v67 = vunpack.c.h.b16 %v33
    %v68 = vpack.c.b16 %v54, %v52
    %v69 = vpack.c.b16 %v55, %v53
    %v70 = vpack.c.b16 %v58, %v56
    %v71 = vpack.c.b16 %v59, %v57
    %v72 = vpack.c.b16 %v62, %v60
    %v73 = vpack.c.b16 %v63, %v61
    %v74 = vpack.c.b16 %v66, %v64
    %v75 = vpack.c.b16 %v67, %v65
    %vm84 = vcmask 523264
    %v86 = vsel %vm84, %v42, 0
    %v89 = vsel %vm84, %v43, 0
    %91 = vmatprep.subr.bf16.mxu0 0
    %92 = vmatpush1.bf16.msra.mxu0 0
    %93 = vmatprep.subr.bf16.mxu0 0
    %94 = vmatpush1.bf16.msra.mxu0 0
    %95 = vmatprep.subr.bf16.mxu0 0
    %96 = vmatpush1.bf16.msra.mxu0 0
    %97 = vmatprep.subr.bf16.mxu0 0
    %98 = vmatpush1.bf16.msra.mxu0 0
    %99 = vmatprep.subr.bf16.mxu0 %v75
    %100 = vmatpush1.bf16.msra.mxu0 %v74
    %101 = vmatprep.subr.bf16.mxu0 %v73
    %102 = vmatpush1.bf16.msra.mxu0 %v72
    %103 = vmatprep.subr.bf16.mxu0 %v71
    %104 = vmatpush1.bf16.msra.mxu0 %v70
    %105 = vmatprep.subr.bf16.mxu0 %v69
    %106 = vmatpush1.bf16.msra.mxu0 %v68
    %107 = vmatprep.subr.bf16.mxu0 0
    %108 = vmatpush2.bf16.msra.mxu0 0
    %109 = vmatprep.subr.bf16.mxu0 0
    %110 = vmatpush2.bf16.msra.mxu0 0
    %111 = vmatprep.subr.bf16.mxu0 0
    %112 = vmatpush2.bf16.msra.mxu0 0
    %113 = vmatprep.subr.bf16.mxu0 0
    %114 = vmatpush2.bf16.msra.mxu0 0
    %115 = vmatprep.subr.bf16.mxu0 0
    %116 = vmatpush2.bf16.msra.mxu0 0
    %117 = vmatprep.subr.bf16.mxu0 0
    %118 = vmatpush2.bf16.msra.mxu0 0
    %119 = vmatprep.subr.bf16.mxu0 0
    %120 = vmatpush2.bf16.msra.mxu0 0
    %121 = vmatprep.subr.bf16.mxu0 0
    %122 = vmatpush2.bf16.msra.mxu0 0
    %123 = vmatprep.mubr.bf16.mxu0 0
    %124 = vmatmul.mubr.bf16.gmra.mxu0 %v86
    %v125 = vpop.f32.mrf.mxu0
    %v126 = vadd.f32 0.0, %v125
    %v127 = vpop.f32.mrf.mxu0
    %v128 = vadd.f32 0.0, %v127
    %v129 = vpop.f32.mrf.mxu0
    %v130 = vadd.f32 0.0, %v129
    %v131 = vpop.f32.mrf.mxu0
    %v132 = vadd.f32 0.0, %v131
    %133 = vmatprep.mubr.bf16.mxu0 0
    %134 = vmatmul.mubr.bf16.gmra.mxu0 %v89
    %v135 = vpop.f32.mrf.mxu0
    %v136 = vadd.f32 0.0, %v135
    %v137 = vpop.f32.mrf.mxu0
    %v138 = vadd.f32 0.0, %v137
    %v139 = vpop.f32.mrf.mxu0
    %v140 = vadd.f32 0.0, %v139
    %v141 = vpop.f32.mrf.mxu0
    %v142 = vadd.f32 0.0, %v141
    %143 = vdwg.mxu0
    %v144 = vld [vmem:[%s3] sm:$0xff]
    %v145 = vld [vmem:[%s3 + $0x10] sm:$0xff]
    %v146 = vld [vmem:[%s3 + $0x20] sm:$0xff]
    %v147 = vld [vmem:[%s3 + $0x30] sm:$0xff]
    %v148 = vmul.f32 %v126, %v144
    %v149 = vmul.f32 %v130, %v145
    %v150 = vmul.f32 %v136, %v146
    %v151 = vmul.f32 %v140, %v147
    %v152 = vld [vmem:[%s3 + $0x8] sm:$0xff]
    %v153 = vld [vmem:[%s3 + $0x18] sm:$0xff]
    %v154 = vld [vmem:[%s3 + $0x28] sm:$0xff]
    %v155 = vld [vmem:[%s3 + $0x38] sm:$0xff]
    %v156 = vmul.f32 %v128, %v152
    %v157 = vmul.f32 %v132, %v153
    %v158 = vmul.f32 %v138, %v154
    %v159 = vmul.f32 %v142, %v155
    %v160 = vadd.f32 %v148, %v156
    %v161 = vadd.f32 %v149, %v157
    %v162 = vadd.f32 %v150, %v158
    %v163 = vadd.f32 %v151, %v159
    %168 = vrot.lane.b32.xlu0 %v160, 112
    %v169 = vpop.permute.xlu0 %168
    %170 = vrot.lane.b32.xlu0 %v161, 112
    %v171 = vpop.permute.xlu0 %170
    %172 = vrot.lane.b32.xlu0 %v162, 112
    %v173 = vpop.permute.xlu0 %172
    %174 = vrot.lane.b32.xlu0 %v163, 112
    %v175 = vpop.permute.xlu0 %174
    %180 = vrot.lane.b32.xlu0 %v160, 96
    %v181 = vpop.permute.xlu0 %180
    %182 = vrot.lane.b32.xlu0 %v161, 96
    %v183 = vpop.permute.xlu0 %182
    %184 = vrot.lane.b32.xlu0 %v162, 96
    %v185 = vpop.permute.xlu0 %184
    %186 = vrot.lane.b32.xlu0 %v163, 96
    %v187 = vpop.permute.xlu0 %186
    %192 = vrot.lane.b32.xlu0 %v160, 80
    %v193 = vpop.permute.xlu0 %192
    %194 = vrot.lane.b32.xlu0 %v161, 80
    %v195 = vpop.permute.xlu0 %194
    %196 = vrot.lane.b32.xlu0 %v162, 80
    %v197 = vpop.permute.xlu0 %196
    %198 = vrot.lane.b32.xlu0 %v163, 80
    %v199 = vpop.permute.xlu0 %198
    %v204 = vpack.c.bf16 %v161, %v160
    %v205 = vpack.c.bf16 %v163, %v162
    %v206 = vpack.c.bf16 %v171, %v169
    %v207 = vpack.c.bf16 %v175, %v173
    %v208 = vpack.c.bf16 %v183, %v181
    %v209 = vpack.c.bf16 %v187, %v185
    %v210 = vpack.c.bf16 %v195, %v193
    %v211 = vpack.c.bf16 %v199, %v197
    %v212 = vld [vmem:[%s4] sm:$0xff]
    %v213 = vld [vmem:[%s4 + $0x8] sm:$0xff]
    %v214 = vld [vmem:[%s4 + $0x10] sm:$0xff]
    %v215 = vld [vmem:[%s4 + $0x18] sm:$0xff]
    %v216 = vld [vmem:[%s4 + $0x20] sm:$0xff]
    %v217 = vld [vmem:[%s4 + $0x28] sm:$0xff]
    %v218 = vld [vmem:[%s4 + $0x30] sm:$0xff]
    %v219 = vld [vmem:[%s4 + $0x38] sm:$0xff]
    %v220 = vld [vmem:[%s4 + $0x40] sm:$0xff]
    %v221 = vld [vmem:[%s4 + $0x48] sm:$0xff]
    %v222 = vld [vmem:[%s4 + $0x50] sm:$0xff]
    %v223 = vld [vmem:[%s4 + $0x58] sm:$0xff]
    %v224 = vld [vmem:[%s4 + $0x60] sm:$0xff]
    %v225 = vld [vmem:[%s4 + $0x68] sm:$0xff]
    %v226 = vld [vmem:[%s4 + $0x70] sm:$0xff]
    %v227 = vld [vmem:[%s4 + $0x78] sm:$0xff]
    %232 = vrot.lane.b32.xlu0 %v204, 64
    %v233 = vpop.permute.xlu0 %232
    %234 = vrot.lane.b32.xlu0 %v205, 64
    %v235 = vpop.permute.xlu0 %234
    %236 = vrot.lane.b32.xlu0 %v206, 64
    %v237 = vpop.permute.xlu0 %236
    %238 = vrot.lane.b32.xlu0 %v207, 64
    %v239 = vpop.permute.xlu0 %238
    %vm240 = vcmask 130048
    %v242 = vsel %vm240, %v204, 0
    %v245 = vsel %vm240, %v205, 0
    %v248 = vsel %vm240, %v206, 0
    %v251 = vsel %vm240, %v207, 0
    %v254 = vsel %vm240, %v208, 0
    %v257 = vsel %vm240, %v209, 0
    %v260 = vsel %vm240, %v210, 0
    %v263 = vsel %vm240, %v211, 0
    %v266 = vsel %vm240, %v233, 0
    %v269 = vsel %vm240, %v235, 0
    %v272 = vsel %vm240, %v237, 0
    %v275 = vsel %vm240, %v239, 0
    %277 = vmatprep.subr.bf16.mxu0 0
    %278 = vmatpush1.bf16.xpose.msra.mxu0 0
    %279 = vmatprep.subr.bf16.mxu0 0
    %280 = vmatpush1.bf16.xpose.msra.mxu0 0
    %281 = vmatprep.subr.bf16.mxu0 0
    %282 = vmatpush1.bf16.xpose.msra.mxu0 0
    %283 = vmatprep.subr.bf16.mxu0 0
    %284 = vmatpush1.bf16.xpose.msra.mxu0 0
    %285 = vmatprep.subr.bf16.mxu0 0
    %286 = vmatpush1.bf16.xpose.msra.mxu0 %v275
    %287 = vmatprep.subr.bf16.mxu0 0
    %288 = vmatpush1.bf16.xpose.msra.mxu0 %v272
    %289 = vmatprep.subr.bf16.mxu0 0
    %290 = vmatpush1.bf16.xpose.msra.mxu0 %v269
    %291 = vmatprep.subr.bf16.mxu0 0
    %292 = vmatpush1.bf16.xpose.msra.mxu0 %v266
    %293 = vmatprep.subr.bf16.mxu0 0
    %294 = vmatpush2.bf16.xpose.msra.mxu0 0
    %295 = vmatprep.subr.bf16.mxu0 0
    %296 = vmatpush2.bf16.xpose.msra.mxu0 0
    %297 = vmatprep.subr.bf16.mxu0 0
    %298 = vmatpush2.bf16.xpose.msra.mxu0 0
    %299 = vmatprep.subr.bf16.mxu0 0
    %300 = vmatpush2.bf16.xpose.msra.mxu0 0
    %301 = vmatprep.subr.bf16.mxu0 0
    %302 = vmatpush2.bf16.xpose.msra.mxu0 0
    %303 = vmatprep.subr.bf16.mxu0 0
    %304 = vmatpush2.bf16.xpose.msra.mxu0 0
    %305 = vmatprep.subr.bf16.mxu0 0
    %306 = vmatpush2.bf16.xpose.msra.mxu0 0
    %307 = vmatprep.subr.bf16.mxu0 0
    %308 = vmatpush2.bf16.xpose.msra.mxu0 0
    %309 = vmatprep.mubr.bf16.mxu0 0
    %310 = vmatmul.mubr.bf16.gmra.mxu0 %v242
    %v311 = vpop.f32.mrf.mxu0
    %v312 = vadd.f32 %v212, %v311
    %v313 = vpop.f32.mrf.mxu0
    %v314 = vpop.f32.mrf.mxu0
    %v315 = vadd.f32 %v213, %v314
    %v316 = vpop.f32.mrf.mxu0
    %317 = vmatprep.mubr.bf16.mxu0 0
    %318 = vmatmul.mubr.bf16.gmra.mxu0 %v245
    %v319 = vpop.f32.mrf.mxu0
    %v320 = vadd.f32 %v214, %v319
    %v321 = vpop.f32.mrf.mxu0
    %v322 = vpop.f32.mrf.mxu0
    %v323 = vadd.f32 %v215, %v322
    %v324 = vpop.f32.mrf.mxu0
    %325 = vmatprep.mubr.bf16.mxu0 0
    %326 = vmatmul.mubr.bf16.gmra.mxu0 %v248
    %v327 = vpop.f32.mrf.mxu0
    %v328 = vadd.f32 %v216, %v327
    %v329 = vpop.f32.mrf.mxu0
    %v330 = vpop.f32.mrf.mxu0
    %v331 = vadd.f32 %v217, %v330
    %v332 = vpop.f32.mrf.mxu0
    %333 = vmatprep.mubr.bf16.mxu0 0
    %334 = vmatmul.mubr.bf16.gmra.mxu0 %v251
    %v335 = vpop.f32.mrf.mxu0
    %v336 = vadd.f32 %v218, %v335
    %v337 = vpop.f32.mrf.mxu0
    %v338 = vpop.f32.mrf.mxu0
    %v339 = vadd.f32 %v219, %v338
    %v340 = vpop.f32.mrf.mxu0
    %341 = vmatprep.mubr.bf16.mxu0 0
    %342 = vmatmul.mubr.bf16.gmra.mxu0 %v254
    %v343 = vpop.f32.mrf.mxu0
    %v344 = vadd.f32 %v220, %v343
    %v345 = vpop.f32.mrf.mxu0
    %v346 = vpop.f32.mrf.mxu0
    %v347 = vadd.f32 %v221, %v346
    %v348 = vpop.f32.mrf.mxu0
    %349 = vmatprep.mubr.bf16.mxu0 0
    %350 = vmatmul.mubr.bf16.gmra.mxu0 %v257
    %v351 = vpop.f32.mrf.mxu0
    %v352 = vadd.f32 %v222, %v351
    %v353 = vpop.f32.mrf.mxu0
    %v354 = vpop.f32.mrf.mxu0
    %v355 = vadd.f32 %v223, %v354
    %v356 = vpop.f32.mrf.mxu0
    %357 = vmatprep.mubr.bf16.mxu0 0
    %358 = vmatmul.mubr.bf16.gmra.mxu0 %v260
    %v359 = vpop.f32.mrf.mxu0
    %v360 = vadd.f32 %v224, %v359
    %v361 = vpop.f32.mrf.mxu0
    %v362 = vpop.f32.mrf.mxu0
    %v363 = vadd.f32 %v225, %v362
    %v364 = vpop.f32.mrf.mxu0
    %365 = vmatprep.mubr.bf16.mxu0 0
    %366 = vmatmul.mubr.bf16.gmra.mxu0 %v263
    %v367 = vpop.f32.mrf.mxu0
    %v368 = vadd.f32 %v226, %v367
    %v369 = vpop.f32.mrf.mxu0
    %v370 = vpop.f32.mrf.mxu0
    %v371 = vadd.f32 %v227, %v370
    %v372 = vpop.f32.mrf.mxu0
    %373 = vdwg.mxu0
    %v374 = vsel %vm84, %v312, -inf
    %375 = vmax.xlane.f32.xlu0 %v374
    %v376 = vpop.xlane.xlu0 %375
    %v377 = vsel %vm84, %v315, -inf
    %378 = vmax.xlane.f32.xlu0 %v377
    %v379 = vpop.xlane.xlu0 %378
    %v380 = vsel %vm84, %v320, -inf
    %381 = vmax.xlane.f32.xlu0 %v380
    %v382 = vpop.xlane.xlu0 %381
    %v383 = vsel %vm84, %v323, -inf
    %384 = vmax.xlane.f32.xlu0 %v383
    %v385 = vpop.xlane.xlu0 %384
    %v386 = vsel %vm84, %v328, -inf
    %387 = vmax.xlane.f32.xlu0 %v386
    %v388 = vpop.xlane.xlu0 %387
    %v389 = vsel %vm84, %v331, -inf
    %390 = vmax.xlane.f32.xlu0 %v389
    %v391 = vpop.xlane.xlu0 %390
    %v392 = vsel %vm84, %v336, -inf
    %393 = vmax.xlane.f32.xlu0 %v392
    %v394 = vpop.xlane.xlu0 %393
    %v395 = vsel %vm84, %v339, -inf
    %396 = vmax.xlane.f32.xlu0 %v395
    %v397 = vpop.xlane.xlu0 %396
    %v398 = vsel %vm84, %v344, -inf
    %399 = vmax.xlane.f32.xlu0 %v398
    %v400 = vpop.xlane.xlu0 %399
    %v401 = vsel %vm84, %v347, -inf
    %402 = vmax.xlane.f32.xlu0 %v401
    %v403 = vpop.xlane.xlu0 %402
    %v404 = vsel %vm84, %v352, -inf
    %405 = vmax.xlane.f32.xlu0 %v404
    %v406 = vpop.xlane.xlu0 %405
    %v407 = vsel %vm84, %v355, -inf
    %408 = vmax.xlane.f32.xlu0 %v407
    %v409 = vpop.xlane.xlu0 %408
    %v410 = vsel %vm84, %v360, -inf
    %411 = vmax.xlane.f32.xlu0 %v410
    %v412 = vpop.xlane.xlu0 %411
    %v413 = vsel %vm84, %v363, -inf
    %414 = vmax.xlane.f32.xlu0 %v413
    %v415 = vpop.xlane.xlu0 %414
    %v416 = vsel %vm84, %v368, -inf
    %417 = vmax.xlane.f32.xlu0 %v416
    %v418 = vpop.xlane.xlu0 %417
    %v419 = vsel %vm84, %v371, -inf
    %420 = vmax.xlane.f32.xlu0 %v419
    %v421 = vpop.xlane.xlu0 %420
    %v422 = vsub.f32 %v312, %v376
    %v423 = vsub.f32 %v315, %v379
    %v424 = vsub.f32 %v320, %v382
    %v425 = vsub.f32 %v323, %v385
    %v426 = vsub.f32 %v328, %v388
    %v427 = vsub.f32 %v331, %v391
    %v428 = vsub.f32 %v336, %v394
    %v429 = vsub.f32 %v339, %v397
    %v430 = vsub.f32 %v344, %v400
    %v431 = vsub.f32 %v347, %v403
    %v432 = vsub.f32 %v352, %v406
    %v433 = vsub.f32 %v355, %v409
    %v434 = vsub.f32 %v360, %v412
    %v435 = vsub.f32 %v363, %v415
    %v436 = vsub.f32 %v368, %v418
    %v437 = vsub.f32 %v371, %v421
    %v438 = vmul.f32 %v422, 1.442695
    %v439 = vpow.pop %v438
    %v440 = vmul.f32 %v423, 1.442695
    %v441 = vpow.pop %v440
    %v442 = vmul.f32 %v424, 1.442695
    %v443 = vpow.pop %v442
    %v444 = vmul.f32 %v425, 1.442695
    %v445 = vpow.pop %v444
    %v446 = vmul.f32 %v426, 1.442695
    %v447 = vpow.pop %v446
    %v448 = vmul.f32 %v427, 1.442695
    %v449 = vpow.pop %v448
    %v450 = vmul.f32 %v428, 1.442695
    %v451 = vpow.pop %v450
    %v452 = vmul.f32 %v429, 1.442695
    %v453 = vpow.pop %v452
    %v454 = vmul.f32 %v430, 1.442695
    %v455 = vpow.pop %v454
    %v456 = vmul.f32 %v431, 1.442695
    %v457 = vpow.pop %v456
    %v458 = vmul.f32 %v432, 1.442695
    %v459 = vpow.pop %v458
    %v460 = vmul.f32 %v433, 1.442695
    %v461 = vpow.pop %v460
    %v462 = vmul.f32 %v434, 1.442695
    %v463 = vpow.pop %v462
    %v464 = vmul.f32 %v435, 1.442695
    %v465 = vpow.pop %v464
    %v466 = vmul.f32 %v436, 1.442695
    %v467 = vpow.pop %v466
    %v468 = vmul.f32 %v437, 1.442695
    %v469 = vpow.pop %v468
    %v470 = vsel %vm84, %v439, 0.0
    %471 = vadd.xlane.f32.xlu0 %v470
    %v472 = vpop.xlane.xlu0 %471
    %v473 = vsel %vm84, %v441, 0.0
    %474 = vadd.xlane.f32.xlu0 %v473
    %v475 = vpop.xlane.xlu0 %474
    %v476 = vsel %vm84, %v443, 0.0
    %477 = vadd.xlane.f32.xlu0 %v476
    %v478 = vpop.xlane.xlu0 %477
    %v479 = vsel %vm84, %v445, 0.0
    %480 = vadd.xlane.f32.xlu0 %v479
    %v481 = vpop.xlane.xlu0 %480
    %v482 = vsel %vm84, %v447, 0.0
    %483 = vadd.xlane.f32.xlu0 %v482
    %v484 = vpop.xlane.xlu0 %483
    %v485 = vsel %vm84, %v449, 0.0
    %486 = vadd.xlane.f32.xlu0 %v485
    %v487 = vpop.xlane.xlu0 %486
    %v488 = vsel %vm84, %v451, 0.0
    %489 = vadd.xlane.f32.xlu0 %v488
    %v490 = vpop.xlane.xlu0 %489
    %v491 = vsel %vm84, %v453, 0.0
    %492 = vadd.xlane.f32.xlu0 %v491
    %v493 = vpop.xlane.xlu0 %492
    %v494 = vsel %vm84, %v455, 0.0
    %495 = vadd.xlane.f32.xlu0 %v494
    %v496 = vpop.xlane.xlu0 %495
    %v497 = vsel %vm84, %v457, 0.0
    %498 = vadd.xlane.f32.xlu0 %v497
    %v499 = vpop.xlane.xlu0 %498
    %v500 = vsel %vm84, %v459, 0.0
    %501 = vadd.xlane.f32.xlu0 %v500
    %v502 = vpop.xlane.xlu0 %501
    %v503 = vsel %vm84, %v461, 0.0
    %504 = vadd.xlane.f32.xlu0 %v503
    %v505 = vpop.xlane.xlu0 %504
    %v506 = vsel %vm84, %v463, 0.0
    %507 = vadd.xlane.f32.xlu0 %v506
    %v508 = vpop.xlane.xlu0 %507
    %v509 = vsel %vm84, %v465, 0.0
    %510 = vadd.xlane.f32.xlu0 %v509
    %v511 = vpop.xlane.xlu0 %510
    %v512 = vsel %vm84, %v467, 0.0
    %513 = vadd.xlane.f32.xlu0 %v512
    %v514 = vpop.xlane.xlu0 %513
    %v515 = vsel %vm84, %v469, 0.0
    %516 = vadd.xlane.f32.xlu0 %v515
    %v517 = vpop.xlane.xlu0 %516
    %v518 = vrcp.pop %v472
    %v519 = vrcp.pop %v475
    %v520 = vrcp.pop %v478
    %v521 = vrcp.pop %v481
    %v522 = vrcp.pop %v484
    %v523 = vrcp.pop %v487
    %v524 = vrcp.pop %v490
    %v525 = vrcp.pop %v493
    %v526 = vrcp.pop %v496
    %v527 = vrcp.pop %v499
    %v528 = vrcp.pop %v502
    %v529 = vrcp.pop %v505
    %v530 = vrcp.pop %v508
    %v531 = vrcp.pop %v511
    %v532 = vrcp.pop %v514
    %v533 = vrcp.pop %v517
    %v534 = vmul.f32 %v439, %v518
    %v535 = vmul.f32 %v441, %v519
    %v536 = vmul.f32 %v443, %v520
    %v537 = vmul.f32 %v445, %v521
    %v538 = vmul.f32 %v447, %v522
    %v539 = vmul.f32 %v449, %v523
    %v540 = vmul.f32 %v451, %v524
    %v541 = vmul.f32 %v453, %v525
    %v542 = vmul.f32 %v455, %v526
    %v543 = vmul.f32 %v457, %v527
    %v544 = vmul.f32 %v459, %v528
    %v545 = vmul.f32 %v461, %v529
    %v546 = vmul.f32 %v463, %v530
    %v547 = vmul.f32 %v465, %v531
    %v548 = vmul.f32 %v467, %v532
    %v549 = vmul.f32 %v469, %v533
    %v550 = vpack.c.bf16 %v535, %v534
    %v551 = vpack.c.bf16 %v537, %v536
    %v552 = vpack.c.bf16 %v539, %v538
    %v553 = vpack.c.bf16 %v541, %v540
    %v554 = vpack.c.bf16 %v543, %v542
    %v555 = vpack.c.bf16 %v545, %v544
    %v556 = vpack.c.bf16 %v547, %v546
    %v557 = vpack.c.bf16 %v549, %v548
    %558 = vrot.lane.b32.xlu0 %v204, 32
    %v559 = vpop.permute.xlu0 %558
    %560 = vrot.lane.b32.xlu0 %v205, 32
    %v561 = vpop.permute.xlu0 %560
    %562 = vrot.lane.b32.xlu0 %v206, 32
    %v563 = vpop.permute.xlu0 %562
    %564 = vrot.lane.b32.xlu0 %v207, 32
    %v565 = vpop.permute.xlu0 %564
    %v571 = vsel %vm84, %v550, 0
    %v574 = vsel %vm84, %v551, 0
    %v577 = vsel %vm84, %v552, 0
    %v580 = vsel %vm84, %v553, 0
    %v583 = vsel %vm84, %v554, 0
    %v586 = vsel %vm84, %v555, 0
    %v589 = vsel %vm84, %v556, 0
    %v592 = vsel %vm84, %v557, 0
    %594 = vmatprep.subr.bf16.mxu0 0
    %595 = vmatpush1.bf16.msra.mxu0 0
    %596 = vmatprep.subr.bf16.mxu0 0
    %597 = vmatpush1.bf16.msra.mxu0 0
    %598 = vmatprep.subr.bf16.mxu0 0
    %599 = vmatpush1.bf16.msra.mxu0 0
    %600 = vmatprep.subr.bf16.mxu0 0
    %601 = vmatpush1.bf16.msra.mxu0 0
    %602 = vmatprep.subr.bf16.mxu0 0
    %603 = vmatpush1.bf16.msra.mxu0 %v565
    %604 = vmatprep.subr.bf16.mxu0 0
    %605 = vmatpush1.bf16.msra.mxu0 %v563
    %606 = vmatprep.subr.bf16.mxu0 0
    %607 = vmatpush1.bf16.msra.mxu0 %v561
    %608 = vmatprep.subr.bf16.mxu0 0
    %609 = vmatpush1.bf16.msra.mxu0 %v559
    %610 = vmatprep.subr.bf16.mxu0 0
    %611 = vmatpush2.bf16.msra.mxu0 0
    %612 = vmatprep.subr.bf16.mxu0 0
    %613 = vmatpush2.bf16.msra.mxu0 0
    %614 = vmatprep.subr.bf16.mxu0 0
    %615 = vmatpush2.bf16.msra.mxu0 0
    %616 = vmatprep.subr.bf16.mxu0 0
    %617 = vmatpush2.bf16.msra.mxu0 0
    %618 = vmatprep.subr.bf16.mxu0 0
    %619 = vmatpush2.bf16.msra.mxu0 0
    %620 = vmatprep.subr.bf16.mxu0 0
    %621 = vmatpush2.bf16.msra.mxu0 0
    %622 = vmatprep.subr.bf16.mxu0 0
    %623 = vmatpush2.bf16.msra.mxu0 0
    %624 = vmatprep.subr.bf16.mxu0 0
    %625 = vmatpush2.bf16.msra.mxu0 0
    %626 = vmatprep.mubr.bf16.mxu0 0
    %627 = vmatmul.mubr.bf16.gmra.mxu0 %v571
    %v628 = vpop.f32.mrf.mxu0
    %v629 = vadd.f32 0.0, %v628
    %v630 = vpop.f32.mrf.mxu0
    %v631 = vpop.f32.mrf.mxu0
    %v632 = vadd.f32 0.0, %v631
    %v633 = vpop.f32.mrf.mxu0
    %634 = vmatprep.mubr.bf16.mxu0 0
    %635 = vmatmul.mubr.bf16.gmra.mxu0 %v574
    %v636 = vpop.f32.mrf.mxu0
    %v637 = vadd.f32 0.0, %v636
    %v638 = vpop.f32.mrf.mxu0
    %v639 = vpop.f32.mrf.mxu0
    %v640 = vadd.f32 0.0, %v639
    %v641 = vpop.f32.mrf.mxu0
    %642 = vmatprep.mubr.bf16.mxu0 0
    %643 = vmatmul.mubr.bf16.gmra.mxu0 %v577
    %v644 = vpop.f32.mrf.mxu0
    %v645 = vadd.f32 0.0, %v644
    %v646 = vpop.f32.mrf.mxu0
    %v647 = vpop.f32.mrf.mxu0
    %v648 = vadd.f32 0.0, %v647
    %v649 = vpop.f32.mrf.mxu0
    %650 = vmatprep.mubr.bf16.mxu0 0
    %651 = vmatmul.mubr.bf16.gmra.mxu0 %v580
    %v652 = vpop.f32.mrf.mxu0
    %v653 = vadd.f32 0.0, %v652
    %v654 = vpop.f32.mrf.mxu0
    %v655 = vpop.f32.mrf.mxu0
    %v656 = vadd.f32 0.0, %v655
    %v657 = vpop.f32.mrf.mxu0
    %658 = vmatprep.mubr.bf16.mxu0 0
    %659 = vmatmul.mubr.bf16.gmra.mxu0 %v583
    %v660 = vpop.f32.mrf.mxu0
    %v661 = vadd.f32 0.0, %v660
    %v662 = vpop.f32.mrf.mxu0
    %v663 = vpop.f32.mrf.mxu0
    %v664 = vadd.f32 0.0, %v663
    %v665 = vpop.f32.mrf.mxu0
    %666 = vmatprep.mubr.bf16.mxu0 0
    %667 = vmatmul.mubr.bf16.gmra.mxu0 %v586
    %v668 = vpop.f32.mrf.mxu0
    %v669 = vadd.f32 0.0, %v668
    %v670 = vpop.f32.mrf.mxu0
    %v671 = vpop.f32.mrf.mxu0
    %v672 = vadd.f32 0.0, %v671
    %v673 = vpop.f32.mrf.mxu0
    %674 = vmatprep.mubr.bf16.mxu0 0
    %675 = vmatmul.mubr.bf16.gmra.mxu0 %v589
    %v676 = vpop.f32.mrf.mxu0
    %v677 = vadd.f32 0.0, %v676
    %v678 = vpop.f32.mrf.mxu0
    %v679 = vpop.f32.mrf.mxu0
    %v680 = vadd.f32 0.0, %v679
    %v681 = vpop.f32.mrf.mxu0
    %682 = vmatprep.mubr.bf16.mxu0 0
    %683 = vmatmul.mubr.bf16.gmra.mxu0 %v592
    %v684 = vpop.f32.mrf.mxu0
    %v685 = vadd.f32 0.0, %v684
    %v686 = vpop.f32.mrf.mxu0
    %v687 = vpop.f32.mrf.mxu0
    %v688 = vadd.f32 0.0, %v687
    %v689 = vpop.f32.mrf.mxu0
    %690 = vdwg.mxu0
    %v691 = vpack.c.bf16 %v632, %v629
    %v692 = vpack.c.bf16 %v640, %v637
    %v693 = vld [vmem:[%s2] sm:$0xf]
    %v694 = vld [vmem:[%s2 + $0x4] sm:$0xf]
    %v695 = vpack.c.bf16 %v648, %v645
    %v696 = vpack.c.bf16 %v656, %v653
    %v697 = vld [vmem:[%s2 + $0x8] sm:$0xf]
    %v698 = vld [vmem:[%s2 + $0xc] sm:$0xf]
    %v701 = vunpack.c.l.b16 %v697
    %v702 = vunpack.c.l.b16 %v698
    %v703 = vpack.c.b16 %v702, %v701
    %v706 = vsel %vm240, %v695, 0
    %v709 = vsel %vm240, %v696, 0
    %711 = vmatprep.subr.bf16.mxu0 0
    %712 = vmatpush1.bf16.msra.mxu0 0
    %713 = vmatprep.subr.bf16.mxu0 0
    %714 = vmatpush1.bf16.msra.mxu0 0
    %715 = vmatprep.subr.bf16.mxu0 0
    %716 = vmatpush1.bf16.msra.mxu0 0
    %717 = vmatprep.subr.bf16.mxu0 0
    %718 = vmatpush1.bf16.msra.mxu0 0
    %719 = vmatprep.subr.bf16.mxu0 0
    %720 = vmatpush1.bf16.msra.mxu0 0
    %721 = vmatprep.subr.bf16.mxu0 0
    %722 = vmatpush1.bf16.msra.mxu0 0
    %723 = vmatprep.subr.bf16.mxu0 0
    %724 = vmatpush1.bf16.msra.mxu0 0
    %725 = vmatprep.subr.bf16.mxu0 0
    %726 = vmatpush1.bf16.msra.mxu0 %v703
    %727 = vmatprep.subr.bf16.mxu0 0
    %728 = vmatpush2.bf16.msra.mxu0 0
    %729 = vmatprep.subr.bf16.mxu0 0
    %730 = vmatpush2.bf16.msra.mxu0 0
    %731 = vmatprep.subr.bf16.mxu0 0
    %732 = vmatpush2.bf16.msra.mxu0 0
    %733 = vmatprep.subr.bf16.mxu0 0
    %734 = vmatpush2.bf16.msra.mxu0 0
    %735 = vmatprep.subr.bf16.mxu0 0
    %736 = vmatpush2.bf16.msra.mxu0 0
    %737 = vmatprep.subr.bf16.mxu0 0
    %738 = vmatpush2.bf16.msra.mxu0 0
    %739 = vmatprep.subr.bf16.mxu0 0
    %740 = vmatpush2.bf16.msra.mxu0 0
    %741 = vmatprep.subr.bf16.mxu0 0
    %742 = vmatpush2.bf16.msra.mxu0 0
    %743 = vmatprep.mubr.bf16.mxu0 0
    %744 = vmatmul.mubr.bf16.gmra.mxu0 %v706
    %v745 = vpop.f32.mrf.mxu0
    %v746 = vadd.f32 0.0, %v745
    %v747 = vpop.f32.mrf.mxu0
    %v748 = vpop.f32.mrf.mxu0
    %v749 = vadd.f32 0.0, %v748
    %v750 = vpop.f32.mrf.mxu0
    %751 = vmatprep.mubr.bf16.mxu0 0
    %752 = vmatmul.mubr.bf16.gmra.mxu0 %v709
    %v753 = vpop.f32.mrf.mxu0
    %v754 = vadd.f32 0.0, %v753
    %v755 = vpop.f32.mrf.mxu0
    %v756 = vpop.f32.mrf.mxu0
    %v757 = vadd.f32 0.0, %v756
    %v758 = vpop.f32.mrf.mxu0
    %759 = vdwg.mxu0
    %v762 = vunpack.c.l.b16 %v693
    %v763 = vunpack.c.l.b16 %v694
    %v764 = vpack.c.b16 %v763, %v762
    %v767 = vsel %vm240, %v691, 0
    %v770 = vsel %vm240, %v692, 0
    %772 = vmatprep.subr.bf16.mxu0 0
    %773 = vmatpush1.bf16.msra.mxu0 0
    %774 = vmatprep.subr.bf16.mxu0 0
    %775 = vmatpush1.bf16.msra.mxu0 0
    %776 = vmatprep.subr.bf16.mxu0 0
    %777 = vmatpush1.bf16.msra.mxu0 0
    %778 = vmatprep.subr.bf16.mxu0 0
    %779 = vmatpush1.bf16.msra.mxu0 0
    %780 = vmatprep.subr.bf16.mxu0 0
    %781 = vmatpush1.bf16.msra.mxu0 0
    %782 = vmatprep.subr.bf16.mxu0 0
    %783 = vmatpush1.bf16.msra.mxu0 0
    %784 = vmatprep.subr.bf16.mxu0 0
    %785 = vmatpush1.bf16.msra.mxu0 0
    %786 = vmatprep.subr.bf16.mxu0 0
    %787 = vmatpush1.bf16.msra.mxu0 %v764
    %788 = vmatprep.subr.bf16.mxu0 0
    %789 = vmatpush2.bf16.msra.mxu0 0
    %790 = vmatprep.subr.bf16.mxu0 0
    %791 = vmatpush2.bf16.msra.mxu0 0
    %792 = vmatprep.subr.bf16.mxu0 0
    %793 = vmatpush2.bf16.msra.mxu0 0
    %794 = vmatprep.subr.bf16.mxu0 0
    %795 = vmatpush2.bf16.msra.mxu0 0
    %796 = vmatprep.subr.bf16.mxu0 0
    %797 = vmatpush2.bf16.msra.mxu0 0
    %798 = vmatprep.subr.bf16.mxu0 0
    %799 = vmatpush2.bf16.msra.mxu0 0
    %800 = vmatprep.subr.bf16.mxu0 0
    %801 = vmatpush2.bf16.msra.mxu0 0
    %802 = vmatprep.subr.bf16.mxu0 0
    %803 = vmatpush2.bf16.msra.mxu0 0
    %804 = vmatprep.mubr.bf16.mxu0 0
    %805 = vmatmul.mubr.bf16.gmra.mxu0 %v767
    %v806 = vpop.f32.mrf.mxu0
    %v807 = vadd.f32 %v746, %v806
    %v808 = vpop.f32.mrf.mxu0
    %v809 = vpop.f32.mrf.mxu0
    %v810 = vadd.f32 %v749, %v809
    %v811 = vpop.f32.mrf.mxu0
    %812 = vmatprep.mubr.bf16.mxu0 0
    %813 = vmatmul.mubr.bf16.gmra.mxu0 %v770
    %v814 = vpop.f32.mrf.mxu0
    %v815 = vadd.f32 %v754, %v814
    %v816 = vpop.f32.mrf.mxu0
    %v817 = vpop.f32.mrf.mxu0
    %v818 = vadd.f32 %v757, %v817
    %v819 = vpop.f32.mrf.mxu0
    %820 = vdwg.mxu0
    %v821 = vpack.c.bf16 %v664, %v661
    %v822 = vpack.c.bf16 %v672, %v669
    %v823 = vld [vmem:[%s2 + $0x10] sm:$0xf]
    %v824 = vld [vmem:[%s2 + $0x14] sm:$0xf]
    %v827 = vunpack.c.l.b16 %v823
    %v828 = vunpack.c.l.b16 %v824
    %v829 = vpack.c.b16 %v828, %v827
    %v832 = vsel %vm240, %v821, 0
    %v835 = vsel %vm240, %v822, 0
    %837 = vmatprep.subr.bf16.mxu0 0
    %838 = vmatpush1.bf16.msra.mxu0 0
    %839 = vmatprep.subr.bf16.mxu0 0
    %840 = vmatpush1.bf16.msra.mxu0 0
    %841 = vmatprep.subr.bf16.mxu0 0
    %842 = vmatpush1.bf16.msra.mxu0 0
    %843 = vmatprep.subr.bf16.mxu0 0
    %844 = vmatpush1.bf16.msra.mxu0 0
    %845 = vmatprep.subr.bf16.mxu0 0
    %846 = vmatpush1.bf16.msra.mxu0 0
    %847 = vmatprep.subr.bf16.mxu0 0
    %848 = vmatpush1.bf16.msra.mxu0 0
    %849 = vmatprep.subr.bf16.mxu0 0
    %850 = vmatpush1.bf16.msra.mxu0 0
    %851 = vmatprep.subr.bf16.mxu0 0
    %852 = vmatpush1.bf16.msra.mxu0 %v829
    %853 = vmatprep.subr.bf16.mxu0 0
    %854 = vmatpush2.bf16.msra.mxu0 0
    %855 = vmatprep.subr.bf16.mxu0 0
    %856 = vmatpush2.bf16.msra.mxu0 0
    %857 = vmatprep.subr.bf16.mxu0 0
    %858 = vmatpush2.bf16.msra.mxu0 0
    %859 = vmatprep.subr.bf16.mxu0 0
    %860 = vmatpush2.bf16.msra.mxu0 0
    %861 = vmatprep.subr.bf16.mxu0 0
    %862 = vmatpush2.bf16.msra.mxu0 0
    %863 = vmatprep.subr.bf16.mxu0 0
    %864 = vmatpush2.bf16.msra.mxu0 0
    %865 = vmatprep.subr.bf16.mxu0 0
    %866 = vmatpush2.bf16.msra.mxu0 0
    %867 = vmatprep.subr.bf16.mxu0 0
    %868 = vmatpush2.bf16.msra.mxu0 0
    %869 = vmatprep.mubr.bf16.mxu0 0
    %870 = vmatmul.mubr.bf16.gmra.mxu0 %v832
    %v871 = vpop.f32.mrf.mxu0
    %v872 = vadd.f32 0.0, %v871
    %v873 = vpop.f32.mrf.mxu0
    %v874 = vpop.f32.mrf.mxu0
    %v875 = vadd.f32 0.0, %v874
    %v876 = vpop.f32.mrf.mxu0
    %877 = vmatprep.mubr.bf16.mxu0 0
    %878 = vmatmul.mubr.bf16.gmra.mxu0 %v835
    %v879 = vpop.f32.mrf.mxu0
    %v880 = vadd.f32 0.0, %v879
    %v881 = vpop.f32.mrf.mxu0
    %v882 = vpop.f32.mrf.mxu0
    %v883 = vadd.f32 0.0, %v882
    %v884 = vpop.f32.mrf.mxu0
    %885 = vdwg.mxu0
    %v886 = vadd.f32 %v807, %v872
    %v887 = vadd.f32 %v810, %v875
    %v888 = vadd.f32 %v815, %v880
    %v889 = vadd.f32 %v818, %v883
    %v890 = vpack.c.bf16 %v680, %v677
    %v891 = vpack.c.bf16 %v688, %v685
    %v892 = vld [vmem:[%s2 + $0x18] sm:$0xf]
    %v893 = vld [vmem:[%s2 + $0x1c] sm:$0xf]
    %v896 = vunpack.c.l.b16 %v892
    %v897 = vunpack.c.l.b16 %v893
    %v898 = vpack.c.b16 %v897, %v896
    %v901 = vsel %vm240, %v890, 0
    %v904 = vsel %vm240, %v891, 0
    %906 = vmatprep.subr.bf16.mxu0 0
    %907 = vmatpush1.bf16.msra.mxu0 0
    %908 = vmatprep.subr.bf16.mxu0 0
    %909 = vmatpush1.bf16.msra.mxu0 0
    %910 = vmatprep.subr.bf16.mxu0 0
    %911 = vmatpush1.bf16.msra.mxu0 0
    %912 = vmatprep.subr.bf16.mxu0 0
    %913 = vmatpush1.bf16.msra.mxu0 0
    %914 = vmatprep.subr.bf16.mxu0 0
    %915 = vmatpush1.bf16.msra.mxu0 0
    %916 = vmatprep.subr.bf16.mxu0 0
    %917 = vmatpush1.bf16.msra.mxu0 0
    %918 = vmatprep.subr.bf16.mxu0 0
    %919 = vmatpush1.bf16.msra.mxu0 0
    %920 = vmatprep.subr.bf16.mxu0 0
    %921 = vmatpush1.bf16.msra.mxu0 %v898
    %922 = vmatprep.subr.bf16.mxu0 0
    %923 = vmatpush2.bf16.msra.mxu0 0
    %924 = vmatprep.subr.bf16.mxu0 0
    %925 = vmatpush2.bf16.msra.mxu0 0
    %926 = vmatprep.subr.bf16.mxu0 0
    %927 = vmatpush2.bf16.msra.mxu0 0
    %928 = vmatprep.subr.bf16.mxu0 0
    %929 = vmatpush2.bf16.msra.mxu0 0
    %930 = vmatprep.subr.bf16.mxu0 0
    %931 = vmatpush2.bf16.msra.mxu0 0
    %932 = vmatprep.subr.bf16.mxu0 0
    %933 = vmatpush2.bf16.msra.mxu0 0
    %934 = vmatprep.subr.bf16.mxu0 0
    %935 = vmatpush2.bf16.msra.mxu0 0
    %936 = vmatprep.subr.bf16.mxu0 0
    %937 = vmatpush2.bf16.msra.mxu0 0
    %938 = vmatprep.mubr.bf16.mxu0 0
    %939 = vmatmul.mubr.bf16.gmra.mxu0 %v901
    %v940 = vpop.f32.mrf.mxu0
    %v941 = vadd.f32 0.0, %v940
    %v942 = vpop.f32.mrf.mxu0
    %v943 = vpop.f32.mrf.mxu0
    %v944 = vadd.f32 0.0, %v943
    %v945 = vpop.f32.mrf.mxu0
    %946 = vmatprep.mubr.bf16.mxu0 0
    %947 = vmatmul.mubr.bf16.gmra.mxu0 %v904
    %v948 = vpop.f32.mrf.mxu0
    %v949 = vadd.f32 0.0, %v948
    %v950 = vpop.f32.mrf.mxu0
    %v951 = vpop.f32.mrf.mxu0
    %v952 = vadd.f32 0.0, %v951
    %v953 = vpop.f32.mrf.mxu0
    %954 = vdwg.mxu0
    %v955 = vadd.f32 %v886, %v941
    %v956 = vadd.f32 %v887, %v944
    %v957 = vadd.f32 %v888, %v949
    %v958 = vadd.f32 %v889, %v952
    %959 = vst.msk [vmem:[#allocation2] sm:$0xff] %vm84, %v955
    %960 = vst.msk [vmem:[#allocation2 + $0x8] sm:$0xff] %vm84, %v956
    %961 = vst.msk [vmem:[#allocation2 + $0x10] sm:$0xff] %vm84, %v957
    %962 = vst.msk [vmem:[#allocation2 + $0x18] sm:$0xff] %vm84, %v958
    // Predicated region
    $region22: #{tpu_custom_call.1} parent=1 // pred_check
      _
    $region23: #{tpu_custom_call.1} parent=1 // pred_check_branch
      %964 = sbr.rel (0) target = $region25
    $region24: #{tpu_custom_call.1} parent=1 // pred_region
      %s966 = ssub.s32 512, 512
      %967 = vsyncadd [#allocation3], %s966
      %s968 = sshll.u32 [#allocation2], 4
      %s969 = int_to_ptr.vmem [resolvable:$true] %s968
      %974 = dma.vmem_to_hbm [thread:$0]  %s969, 512, %s5, [#allocation3], 128, 128, 8
    $region25: #{tpu_custom_call.1} parent=1 // pred_fallthru
      _
    // Predicated region
    $region26: #{tpu_custom_call.1} parent=1 // pred_check
      _
    $region27: #{tpu_custom_call.1} parent=1 // pred_check_branch
      %976 = sbr.rel (0) target = $region29
    $region28: #{tpu_custom_call.1} parent=1 // pred_region
      %977 = dma.done [#allocation3], 512
    $region29: #{tpu_custom_call.1} parent=1 // pred_fallthru
      _
    %978 = vsyncpa [#allocation3], 1

</llo_original>
